<compile_context>
chip_gen: v7x
topology: tpu7x:2x2x1
jax: 0.10.0
libtpu: 0.0.40
codegen_flags: <defaults>
</compile_context>

<pallas_src>
import functools
import math

import jax
import jax.numpy as jnp
from jax import lax
from jax.experimental import pallas as pl
from jax.experimental.pallas import tpu as pltpu


# bf16 is MXU-native on v5e/v6e/v7x; accumulation stays f32 via preferred_element_type.
COMPUTE_DTYPE = jnp.bfloat16

# Explicit scoped-VMEM limit: above the 32 MiB default, <= v7x's 64 MiB physical.
VMEM_LIMIT_BYTES = 64 * 1024 * 1024
# Per-grid-step working-set budget used to pick the attention head chunk.
ATTN_VMEM_BUDGET = 28 * 1024 * 1024

_NEG_BIG = -1e30  # finite "-inf": avoids NaN for fully-masked rows


def _tile(dim, target, align):
    """Largest block size <= target that divides `dim` and is a multiple of `align`,
    falling back to the full dimension (full-extent blocks are always legal)."""
    if dim <= target:
        return dim
    t = (target // align) * align
    while t >= align:
        if dim % t == 0:
            return t
        t -= align
    # No aligned divisor: a partial block would break the (8,128) layout rule, so
    # the only legal choice is the full extent.  Guard against silent VMEM blow-up.
    # TODO(synk): pad-and-mask edge tiles instead of requiring divisibility.
    if dim > 4 * target:
        raise ValueError(
            f"dimension {dim} has no tile <= {target} that is a multiple of {align}; "
            f"pad the input to a multiple of {align}.")
    return dim


def _choose_head_chunk(H, Dk, Dv, tq, tkv, *, itemsize, budget):
    """Heads processed per attention grid step.

    Legal chunks: hc | H, and (hc % 8 == 0 and hc*Dv % 128 == 0) or hc == H
    (full-extent blocks are always legal).  Among legal chunks pick the largest
    whose per-step working set (double-buffered q/k/v/out blocks + scratch +
    (hc, tq, tkv) score/probability temporaries) fits `budget` — this is what
    keeps big-H configs inside v7x's 64 MiB VMEM."""
    def legal(hc):
        if H % hc:
            return False
        if hc == H:
            return True
        return hc % 8 == 0 and (hc * Dv) % 128 == 0

    def working_set(hc):
        qkv = 2 * hc * (tq * Dk + tkv * (Dk + Dv)) * itemsize   # double-buffered blocks
        outb = 2 * tq * hc * Dv * itemsize
        scr = hc * tq * (Dk * itemsize + (Dv + 2) * 4)          # q scratch + m/l/acc
        tmp = 3 * hc * tq * tkv * 4                             # scores, probs, slack
        return qkv + outb + scr + tmp

    legal_hcs = sorted((hc for hc in range(1, H + 1) if legal(hc)), reverse=True)
    for hc in legal_hcs:
        if working_set(hc) <= budget:
            return hc
    return legal_hcs[-1]


# ------------------------------ tiled matmul ------------------------------- #

def _matmul_kernel(x_ref, w_ref, o_ref, acc_ref, *, mxu_dtype):
    @pl.when(pl.program_id(2) == 0)
    def _init():
        acc_ref[...] = jnp.zeros_like(acc_ref)

    acc_ref[...] += jnp.dot(
        x_ref[...].astype(mxu_dtype), w_ref[...].astype(mxu_dtype),
        preferred_element_type=jnp.float32)

    @pl.when(pl.program_id(2) == pl.num_programs(2) - 1)
    def _store():
        o_ref[...] = acc_ref[...].astype(o_ref.dtype)


def pallas_matmul(x, w, *, out_dtype=jnp.float32, tm=512, tn=512, tk=1024,
                  mxu_dtype=COMPUTE_DTYPE):
    """x: (M, K), w: (K, N) -> (M, N) in `out_dtype`.  Tiled + pipelined on the MXU."""
    M, K = x.shape
    K2, N = w.shape
    assert K == K2
    bm = _tile(M, tm, 8)
    bn = _tile(N, tn, 128)
    bk = _tile(K, tk, 128)
    kern = functools.partial(_matmul_kernel, mxu_dtype=mxu_dtype)
    return pl.pallas_call(
        kern,
        out_shape=jax.ShapeDtypeStruct((M, N), out_dtype),
        grid=(M // bm, N // bn, K // bk),
        in_specs=[
            pl.BlockSpec((bm, bk), lambda i, j, k: (i, k)),
            pl.BlockSpec((bk, bn), lambda i, j, k: (k, j)),
        ],
        out_specs=pl.BlockSpec((bm, bn), lambda i, j, k: (i, j)),
        scratch_shapes=[pltpu.VMEM((bm, bn), jnp.float32)],
        compiler_params=pltpu.CompilerParams(
            dimension_semantics=("parallel", "parallel", "arbitrary"),
            vmem_limit_bytes=VMEM_LIMIT_BYTES),
    )(x, w)


# --------------------------- flash-style attention -------------------------- #

def _mha_body(q_ref, k_ref, v_ref, mask_ref, o_ref, q_sc, m_sc, l_sc, acc_sc,
              *, mxu_dtype):
    ki = pl.program_id(3)

    @pl.when(ki == 0)
    def _init():
        # q is resident across the kv axis: the head-major shuffle (and the
        # already-folded 1/sqrt(dk) scaling) happens once per (b, head-chunk, q-tile).
        q_blk = q_ref[...]                                     # (tq, 1, Hc, Dk)
        q_sc[...] = jnp.transpose(q_blk[:, 0], (1, 0, 2)).astype(q_sc.dtype)
        m_sc[...] = jnp.full_like(m_sc, _NEG_BIG)
        l_sc[...] = jnp.zeros_like(l_sc)
        acc_sc[...] = jnp.zeros_like(acc_sc)

    # In-kernel head-major shuffle of the streamed k/v tiles (XLU work, no HBM copies).
    k_h = jnp.transpose(k_ref[...][:, 0], (1, 0, 2)).astype(mxu_dtype)   # (Hc, tkv, Dk)
    v_h = jnp.transpose(v_ref[...][:, 0], (1, 0, 2)).astype(mxu_dtype)   # (Hc, tkv, Dv)

    s = lax.dot_general(q_sc[...], k_h, (((2,), (2,)), ((0,), (0,))),
                        preferred_element_type=jnp.float32)              # (Hc, tq, tkv)
    if mask_ref is not None:
        # (1, tq, tkv) int8 mask, broadcast over the head-chunk dim.
        s = jnp.where(mask_ref[...] != 0, _NEG_BIG, s)

    # Online softmax (running max / denominator / accumulator in VMEM scratch).
    m_prev = m_sc[...]
    m_new = jnp.maximum(m_prev, jnp.max(s, axis=-1, keepdims=True))      # (Hc, tq, 1)
    alpha = jnp.exp(m_prev - m_new)
    p = jnp.exp(s - m_new)                                               # (Hc, tq, tkv)
    l_sc[...] = alpha * l_sc[...] + jnp.sum(p, axis=-1, keepdims=True)
    pv = lax.dot_general(p.astype(mxu_dtype), v_h, (((2,), (1,)), ((0,), (0,))),
                         preferred_element_type=jnp.float32)             # (Hc, tq, Dv)
    acc_sc[...] = alpha * acc_sc[...] + pv
    m_sc[...] = m_new

    @pl.when(ki == pl.num_programs(3) - 1)
    def _finalize():
        # Normalization deferred to after P@V; approx reciprocal runs on the EUP.
        ctx = (acc_sc[...] * pl.reciprocal(l_sc[...], approx=True)).astype(o_ref.dtype)
        hc, tq, dv = ctx.shape
        # Single lane-dense (tq, Hc*Dv) store == the module's Transpose(1,2)+Flatten(2)
        # layout — no per-head sub-128-lane masked stores.
        o_ref[0] = jnp.transpose(ctx, (1, 0, 2)).reshape(tq, hc * dv)


def _mha_kernel_nomask(q_ref, k_ref, v_ref, o_ref, q_sc, m_sc, l_sc, acc_sc, **kw):
    _mha_body(q_ref, k_ref, v_ref, None, o_ref, q_sc, m_sc, l_sc, acc_sc, **kw)


def _mha_kernel_mask(q_ref, k_ref, v_ref, mask_ref, o_ref, q_sc, m_sc, l_sc, acc_sc, **kw):
    _mha_body(q_ref, k_ref, v_ref, mask_ref, o_ref, q_sc, m_sc, l_sc, acc_sc, **kw)


def pallas_mha(q, k, v, mask=None, *, tq_target=256, tkv_target=512,
               mxu_dtype=COMPUTE_DTYPE, out_dtype=COMPUTE_DTYPE,
               vmem_budget=ATTN_VMEM_BUDGET):
    """q: (Sq,B,H,Dk), k: (Sk,B,H,Dk), v: (Sk,B,H,Dv) — natural post-projection layout
    (pure views of the projection matmul outputs, no HBM transpose).
    mask: (1-or-B, Sq, Sk) int8 or None.  Returns the context already flattened to
    (B, Sq, H*Dv) in `out_dtype`."""
    Sq, B, H, Dk = q.shape
    Sk = k.shape[0]
    Dv = v.shape[-1]
    tq = _tile(Sq, tq_target, 8)
    tkv = _tile(Sk, tkv_target, 128)
    hc = _choose_head_chunk(H, Dk, Dv, tq, tkv,
                            itemsize=jnp.dtype(q.dtype).itemsize, budget=vmem_budget)
    kern_kw = dict(mxu_dtype=mxu_dtype)

    in_specs = [
        pl.BlockSpec((tq, 1, hc, Dk), lambda b, h, qi, ki: (qi, b, h, 0)),
        pl.BlockSpec((tkv, 1, hc, Dk), lambda b, h, qi, ki: (ki, b, h, 0)),
        pl.BlockSpec((tkv, 1, hc, Dv), lambda b, h, qi, ki: (ki, b, h, 0)),
    ]
    inputs = [q, k, v]
    if mask is None:
        kern = functools.partial(_mha_kernel_nomask, **kern_kw)
    else:
        kern = functools.partial(_mha_kernel_mask, **kern_kw)
        if mask.shape[0] == 1:
            mspec = pl.BlockSpec((1, tq, tkv), lambda b, h, qi, ki: (0, qi, ki))
        else:
            mspec = pl.BlockSpec((1, tq, tkv), lambda b, h, qi, ki: (b, qi, ki))
        in_specs.append(mspec)
        inputs.append(mask)

    return pl.pallas_call(
        kern,
        out_shape=jax.ShapeDtypeStruct((B, Sq, H * Dv), out_dtype),
        grid=(B, H // hc, Sq // tq, Sk // tkv),
        in_specs=in_specs,
        out_specs=pl.BlockSpec((1, tq, hc * Dv), lambda b, h, qi, ki: (b, qi, h)),
        scratch_shapes=[
            pltpu.VMEM((hc, tq, Dk), mxu_dtype),     # head-major q (resident over kv)
            pltpu.VMEM((hc, tq, 1), jnp.float32),    # running max
            pltpu.VMEM((hc, tq, 1), jnp.float32),    # running denominator
            pltpu.VMEM((hc, tq, Dv), jnp.float32),   # running accumulator
        ],
        compiler_params=pltpu.CompilerParams(
            dimension_semantics=("parallel", "parallel", "parallel", "arbitrary"),
            vmem_limit_bytes=VMEM_LIMIT_BYTES),
    )(*inputs)


# ----------------------------- module equivalent ---------------------------- #

def init_params(key, embedding_dim, kq_dim, value_dim, heads):
    """Deterministic init matching nn.Linear(bias=False) weight shapes (out, in)."""
    k1, k2, k3, k4 = jax.random.split(key, 4)

    def linear_w(k, out_f, in_f):
        bound = 1.0 / math.sqrt(in_f)
        return jax.random.uniform(k, (out_f, in_f), jnp.float32, -bound, bound)

    return {
        "w_q": linear_w(k1, heads * kq_dim, embedding_dim),
        "w_k": linear_w(k2, heads * kq_dim, embedding_dim),
        "w_v": linear_w(k3, heads * value_dim, embedding_dim),
        "w_o": linear_w(k4, embedding_dim, heads * value_dim),
    }


def self_attention(params, inputs_query, inputs_key, inputs_value, mask=None,
                   *, kq_dim, value_dim, heads, compute_dtype=COMPUTE_DTYPE):
    Sq, B, E = inputs_query.shape
    Sk = inputs_key.shape[0]
    assert inputs_value.shape[0] == Sk, "key/value sequence lengths must match"
    H, Dk, Dv = heads, kq_dim, value_dim

    # 1/sqrt(dk) folded into the (tiny) query weight: no per-kv-tile scaling in-kernel.
    wq = params["w_q"] * (1.0 / math.sqrt(Dk))
    wk, wv, wo = params["w_k"], params["w_v"], params["w_o"]

    # Projections emitted directly in bf16.  (S*B, H*D) -> (S, B, H, D) reshapes are
    # free views; the head split happens inside the attention kernel, so there are no
    # activation-sized slice/transpose round trips through HBM.
    xq = inputs_query.reshape(Sq * B, E)
    xk = inputs_key.reshape(Sk * B, E)
    xv = inputs_value.reshape(Sk * B, E)
    q = pallas_matmul(xq, wq.T, out_dtype=compute_dtype,
                      mxu_dtype=compute_dtype).reshape(Sq, B, H, Dk)
    k = pallas_matmul(xk, wk.T, out_dtype=compute_dtype,
                      mxu_dtype=compute_dtype).reshape(Sk, B, H, Dk)
    v = pallas_matmul(xv, wv.T, out_dtype=compute_dtype,
                      mxu_dtype=compute_dtype).reshape(Sk, B, H, Dv)

    mask_i8 = None
    if mask is not None:
        m4 = jnp.asarray(mask)
        m4 = m4.reshape((1,) * (4 - m4.ndim) + m4.shape)   # -> broadcastable 4D
        if m4.shape[1] != 1:
            # TODO(synk): per-head masks would need a head-indexed mask BlockSpec.
            raise NotImplementedError("per-head attention masks are not supported")
        bm = B if m4.shape[0] == B else 1
        # Never materialized at (B, H, Sq, Sk): at most (B, Sq, Sk) int8.
        # TODO(synk): for causal decoding the mask could be generated in-kernel from
        # iota (zero HBM traffic) with fully-masked kv tiles skipped.
        mask_i8 = jnp.broadcast_to(m4[:, 0], (bm, Sq, Sk)).astype(jnp.int8)

    # Flash attention; output is (B, Sq, H*Dv) bf16, already in the module's
    # Transpose(1,2)+Flatten(2) layout for the output Linear.
    ctx = pallas_mha(q, k, v, mask_i8, mxu_dtype=compute_dtype, out_dtype=compute_dtype)

    out = pallas_matmul(ctx.reshape(B * Sq, H * Dv), wo.T,
                        out_dtype=jnp.float32, mxu_dtype=compute_dtype)
    # TODO(synk): nn.Dropout(0.1) is identity in eval mode; training-mode dropout not implemented.
    return out.reshape(B, Sq, E).transpose(1, 0, 2)               # (Sq, B, E)


# Pure-JAX f32 reference (mirrors the PyTorch forward exactly) for verification.
def self_attention_ref(params, q_in, k_in, v_in, mask=None,
                       *, kq_dim, value_dim, heads):
    Sq, B, E = q_in.shape
    Sk = k_in.shape[0]
    Sv = v_in.shape[0]
    q = (q_in @ params["w_q"].T).reshape(Sq, B, heads, kq_dim).transpose(1, 2, 0, 3)
    k = (k_in @ params["w_k"].T).reshape(Sk, B, heads, kq_dim).transpose(1, 2, 3, 0)
    v = (v_in @ params["w_v"].T).reshape(Sv, B, heads, value_dim).transpose(1, 2, 0, 3)
    attn = (q @ k) / math.sqrt(kq_dim)
    if mask is not None:
        attn = jnp.where(jnp.broadcast_to(mask, attn.shape), -jnp.inf, attn)
    attn = jax.nn.softmax(attn, axis=-1)
    ctx = attn @ v                                                # (B, H, Sq, Dv)
    ctx = ctx.transpose(0, 2, 1, 3).reshape(B, Sq, heads * value_dim)
    out = ctx @ params["w_o"].T
    return out.transpose(1, 0, 2)                                 # (Sq, B, E)


if __name__ == "__main__":
    # Small shapes consistent with the module: seq=8, batch=2, embedding=32,
    # heads=4, key/query dim=8, value dim=8.
    S, B, E, H, DK, DV = 8, 2, 32, 4, 8, 8

    root = jax.random.PRNGKey(0)
    kp, kx, km = jax.random.split(root, 3)
    params = init_params(kp, E, DK, DV, H)

    # bf16 MXU operands (f32 accumulation) + approx reciprocal dominate the error
    # vs the f32 reference; real bugs produce O(1) errors.
    ATOL = RTOL = 3e-2

    # (1) Self-attention, no mask.
    x = jax.random.normal(kx, (S, B, E), jnp.float32)
    out1 = self_attention(params, x, x, x, None, kq_dim=DK, value_dim=DV, heads=H)
    out1 = jax.block_until_ready(out1)
    ref1 = self_attention_ref(params, x, x, x, None, kq_dim=DK, value_dim=DV, heads=H)
    assert out1.shape == (S, B, E)
    err1 = float(jnp.max(jnp.abs(out1 - ref1)))
    assert jnp.allclose(out1, ref1, atol=ATOL, rtol=RTOL), f"self-attention mismatch: {err1}"

    # (2) Cross-attention with a causal mask (kernel never sees a (B,H,Sq,Sk) mask).
    mem = jax.random.normal(km, (S, B, E), jnp.float32)
    causal = jnp.triu(jnp.ones((S, S), dtype=bool), k=1)   # True == masked
    out2 = self_attention(params, x, mem, mem, causal, kq_dim=DK, value_dim=DV, heads=H)
    out2 = jax.block_until_ready(out2)
    ref2 = self_attention_ref(params, x, mem, mem, causal, kq_dim=DK, value_dim=DV, heads=H)
    assert out2.shape == (S, B, E)
    err2 = float(jnp.max(jnp.abs(out2 - ref2)))
    assert jnp.allclose(out2, ref2, atol=ATOL, rtol=RTOL), f"masked attention mismatch: {err2}"

    print("KERNEL_OK")
</pallas_src>

<mosaic_0001>
module attributes {stable_mosaic.version = 11 : i64} {
  func.func @_matmul_kernel(%arg0: i32, %arg1: i32, %arg2: i32, %arg3: memref<16x32xf32, #tpu.memory_space<vmem>>, %arg4: memref<32x32xf32, #tpu.memory_space<vmem>>, %arg5: memref<16x32xbf16, #tpu.memory_space<vmem>>, %arg6: memref<16x32xf32, #tpu.memory_space<vmem>>) attributes {dimension_semantics = [#tpu.dimension_semantics<parallel>, #tpu.dimension_semantics<parallel>, #tpu.dimension_semantics<arbitrary>], iteration_bounds = array<i64: 1, 1, 1>, scalar_prefetch = 0 : i64, scratch_operands = 1 : i64, tpu.core_type = #tpu.core_type<tc>, window_params = [{transform_indices = @transform_0, window_bounds = array<i64: 16, 32>}, {transform_indices = @transform_1, window_bounds = array<i64: 32, 32>}, {transform_indices = @transform_2, window_bounds = array<i64: 16, 32>}]} {
    %c0_i32 = arith.constant 0 : i32
    %0 = arith.cmpi eq, %arg2, %c0_i32 : i32
    %1 = arith.extui %0 : i1 to i32
    %c0_i32_0 = arith.constant 0 : i32
    %2 = arith.cmpi ne, %1, %c0_i32_0 : i32
    scf.if %2 {
      %cst_10 = arith.constant 0.000000e+00 : f32
      %14 = vector.broadcast %cst_10 : f32 to vector<16x32xf32>
      %c0_11 = arith.constant 0 : index
      %c0_12 = arith.constant 0 : index
      %15 = vector.load %arg6[%c0_11, %c0_12] : memref<16x32xf32, #tpu.memory_space<vmem>>, vector<16x32xf32>
      tpu.vector_store %arg6[%c0_11, %c0_12], %14 {strides = array<i32>} : memref<16x32xf32, #tpu.memory_space<vmem>>, vector<16x32xf32>,
    } else {
    }
    %c0 = arith.constant 0 : index
    %c0_1 = arith.constant 0 : index
    %3 = vector.load %arg6[%c0, %c0_1] : memref<16x32xf32, #tpu.memory_space<vmem>>, vector<16x32xf32>
    %c0_2 = arith.constant 0 : index
    %c0_3 = arith.constant 0 : index
    %4 = vector.load %arg3[%c0_2, %c0_3] : memref<16x32xf32, #tpu.memory_space<vmem>>, vector<16x32xf32>
    %5 = arith.truncf %4 : vector<16x32xf32> to vector<16x32xbf16>
    %c0_4 = arith.constant 0 : index
    %c0_5 = arith.constant 0 : index
    %6 = vector.load %arg4[%c0_4, %c0_5] : memref<32x32xf32, #tpu.memory_space<vmem>>, vector<32x32xf32>
    %7 = arith.truncf %6 : vector<32x32xf32> to vector<32x32xbf16>
    %cst = arith.constant dense<0.000000e+00> : vector<16x32xf32>
    %8 = tpu.matmul %5, %7, %cst {dimension_numbers = #tpu.dot_dimension_numbers<[1], [0], [0], [1], [0, 0, 1, 1], [], []>} : vector<16x32xbf16>, vector<32x32xbf16>, vector<16x32xf32> -> vector<16x32xf32>
    %9 = arith.addf %3, %8 : vector<16x32xf32>
    %c0_6 = arith.constant 0 : index
    %c0_7 = arith.constant 0 : index
    %10 = vector.load %arg6[%c0_6, %c0_7] : memref<16x32xf32, #tpu.memory_space<vmem>>, vector<16x32xf32>
    tpu.vector_store %arg6[%c0_6, %c0_7], %9 {strides = array<i32>} : memref<16x32xf32, #tpu.memory_space<vmem>>, vector<16x32xf32>,
    %c0_i32_8 = arith.constant 0 : i32
    %11 = arith.cmpi eq, %arg2, %c0_i32_8 : i32
    %12 = arith.extui %11 : i1 to i32
    %c0_i32_9 = arith.constant 0 : i32
    %13 = arith.cmpi ne, %12, %c0_i32_9 : i32
    scf.if %13 {
      %c0_10 = arith.constant 0 : index
      %c0_11 = arith.constant 0 : index
      %14 = vector.load %arg6[%c0_10, %c0_11] : memref<16x32xf32, #tpu.memory_space<vmem>>, vector<16x32xf32>
      %15 = arith.truncf %14 : vector<16x32xf32> to vector<16x32xbf16>
      %c0_12 = arith.constant 0 : index
      %c0_13 = arith.constant 0 : index
      %16 = vector.load %arg5[%c0_12, %c0_13] : memref<16x32xbf16, #tpu.memory_space<vmem>>, vector<16x32xbf16>
      tpu.vector_store %arg5[%c0_12, %c0_13], %15 {strides = array<i32>} : memref<16x32xbf16, #tpu.memory_space<vmem>>, vector<16x32xbf16>,
    } else {
    }
    return
  }
  func.func @transform_0(%arg0: i32, %arg1: i32, %arg2: i32) -> (i32, i32) {
    %c0_i32 = arith.constant 0 : i32
    return %arg0, %arg2 : i32, i32
  }
  func.func @transform_1(%arg0: i32, %arg1: i32, %arg2: i32) -> (i32, i32) {
    %c0_i32 = arith.constant 0 : i32
    return %arg2, %arg1 : i32, i32
  }
  func.func @transform_2(%arg0: i32, %arg1: i32, %arg2: i32) -> (i32, i32) {
    %c0_i32 = arith.constant 0 : i32
    return %arg0, %arg1 : i32, i32
  }
}

</mosaic_0001>

<llo_original>
// kernel: tpu_custom_call.1
$region0: #{tpu_custom_call.1}
  #allocation0 [shape = 'u32[]', space=smem, size = 0x4, offset = 0x4, fixed_abs, tag = 'smem constant byte address 0x4 - core index']
  #allocation1 [shape = 'u32[144,128]{1,0:T(1,128)}', space=vmem, size = 0x12000, scoped, tag = 'internal scratch']
  #allocation2 [shape = 'f32[16,32]{1,0:T(8,128)}', space=vmem, size = 0x2000, scoped, tag = 'scratch operand']
  %s0 = inlined_call_operand.hbm [shape: f32[16,32], index: 0, kind: input, shape index: {}]
  %s1 = inlined_call_operand.hbm [shape: f32[32,32], index: 1, kind: input, shape index: {}]
  %s2 = inlined_call_operand.hbm [shape: bf16[16,32], index: 2, kind: output, shape index: {}]
  %s3 = sld [smem:[#allocation0]]
  $region34: #{tpu_custom_call.1} parent=0
    _
  %s5 = ssub.s32 1, %s3
  %s6 = scalar_select 0, %s5, %s3
  $region1: #{tpu_custom_call.1} parent=0
    #allocation3 [shape = 'u8[8192]{0}', space=vmem, size = 0x2000, scoped, tag = 'input window, operand 0, single buffered']
    #allocation4 [shape = 's32[1]{0}', space=sflag, size = 0x4, scoped, tag = 'scoped memory for tpu_custom_call.1']
    #allocation5 [shape = 's32[1]{0}', space=sflag, size = 0x4, scoped, tag = 'scoped memory for tpu_custom_call.1']
    #allocation6 [shape = 'u8[16384]{0}', space=vmem, size = 0x4000, scoped, tag = 'input window, operand 1, single buffered']
    #allocation7 [shape = 's32[1]{0}', space=sflag, size = 0x4, scoped, tag = 'scoped memory for tpu_custom_call.1']
    #allocation8 [shape = 'u8[4096]{0}', space=vmem, size = 0x1000, scoped, tag = 'output window, operand 0, single buffered']
    %7 = vsyncpa [#allocation4], 0
    %8 = vsyncpa [#allocation7], 0
    %9 = vsyncpa [#allocation5], 0
    // Predicated region
    $region2: #{tpu_custom_call.1} parent=1 // pred_check
      _
    $region3: #{tpu_custom_call.1} parent=1 // pred_check_branch
      %11 = sbr.rel (0) target = $region5
    $region4: #{tpu_custom_call.1} parent=1 // pred_region
      %s13 = ssub.s32 256, 256
      %14 = vsyncadd [#allocation4], %s13
      %s15 = sshll.u32 [#allocation3], 4
      %s16 = int_to_ptr.vmem [resolvable:$true] %s15
      %21 = dma.hbm_to_vmem [thread:$0]  %s0, 256, %s16, [#allocation4], 128, 128, 8
    $region5: #{tpu_custom_call.1} parent=1 // pred_fallthru
      _
    // Predicated region
    $region6: #{tpu_custom_call.1} parent=1 // pred_check
      _
    $region7: #{tpu_custom_call.1} parent=1 // pred_check_branch
      %23 = sbr.rel (0) target = $region9
    $region8: #{tpu_custom_call.1} parent=1 // pred_region
      %s25 = ssub.s32 512, 512
      %26 = vsyncadd [#allocation7], %s25
      %s27 = sshll.u32 [#allocation6], 4
      %s28 = int_to_ptr.vmem [resolvable:$true] %s27
      %33 = dma.hbm_to_vmem [thread:$0]  %s1, 512, %s28, [#allocation7], 128, 128, 8
    $region9: #{tpu_custom_call.1} parent=1 // pred_fallthru
      _
    // Predicated region
    $region10: #{tpu_custom_call.1} parent=1 // pred_check
      _
    $region11: #{tpu_custom_call.1} parent=1 // pred_check_branch
      %35 = sbr.rel (0) target = $region13
    $region12: #{tpu_custom_call.1} parent=1 // pred_region
      %36 = dma.done [#allocation4], 256
    $region13: #{tpu_custom_call.1} parent=1 // pred_fallthru
      _
    // Predicated region
    $region14: #{tpu_custom_call.1} parent=1 // pred_check
      _
    $region15: #{tpu_custom_call.1} parent=1 // pred_check_branch
      %38 = sbr.rel (0) target = $region17
    $region16: #{tpu_custom_call.1} parent=1 // pred_region
      %39 = dma.done [#allocation7], 512
    $region17: #{tpu_custom_call.1} parent=1 // pred_fallthru
      _
    %p41 = scmp.eq.s32.totalorder 0, 0
    // Predicated region
    $region18: #{tpu_custom_call.1} parent=1 // pred_check
      %p42 = pneg %p41
    $region19: #{tpu_custom_call.1} parent=1 // pred_check_branch
      %44 = sbr.rel (%p42) target = $region21
    $region20: #{tpu_custom_call.1} parent=1 // pred_region
      %vm45 = vcmask 261120
      %46 = vst.msk [vmem:[#allocation2] sm:$0xff] %vm45, 0.0
      %47 = vst.msk [vmem:[#allocation2 + $0x8] sm:$0xff] %vm45, 0.0
    $region21: #{tpu_custom_call.1} parent=1 // pred_fallthru
      _
    %v48 = vld [vmem:[#allocation2] sm:$0xff]
    %v49 = vld [vmem:[#allocation2 + $0x8] sm:$0xff]
    %v50 = vld [vmem:[#allocation3] sm:$0xff]
    %v51 = vld [vmem:[#allocation3 + $0x8] sm:$0xff]
    %v52 = vpack.c.bf16 %v51, %v50
    %v53 = vld [vmem:[#allocation6] sm:$0xff]
    %v54 = vld [vmem:[#allocation6 + $0x8] sm:$0xff]
    %v55 = vld [vmem:[#allocation6 + $0x10] sm:$0xff]
    %v56 = vld [vmem:[#allocation6 + $0x18] sm:$0xff]
    %v57 = vpack.c.bf16 %v54, %v53
    %v58 = vpack.c.bf16 %v56, %v55
    %vm59 = vcmask 261120
    %v61 = vsel %vm59, %v52, 0
    %63 = vmatprep.subr.bf16.mxu0 0
    %64 = vmatpush1.bf16.msra.mxu0 %v57
    %65 = vmatprep.subr.bf16.mxu0 0
    %66 = vmatpush1.bf16.msra.mxu0 %v58
    %67 = vmatprep.subr.bf16.mxu0 0
    %68 = vmatpush1.bf16.msra.mxu0 0
    %69 = vmatprep.subr.bf16.mxu0 0
    %70 = vmatpush1.bf16.msra.mxu0 0
    %71 = vmatprep.subr.bf16.mxu0 0
    %72 = vmatpush1.bf16.msra.mxu0 0
    %73 = vmatprep.subr.bf16.mxu0 0
    %74 = vmatpush1.bf16.msra.mxu0 0
    %75 = vmatprep.subr.bf16.mxu0 0
    %76 = vmatpush1.bf16.msra.mxu0 0
    %77 = vmatprep.subr.bf16.mxu0 0
    %78 = vmatpush1.bf16.msra.mxu0 0
    %79 = vmatprep.subr.bf16.mxu0 0
    %80 = vmatpush1.bf16.msra.mxu0 0
    %81 = vmatprep.subr.bf16.mxu0 0
    %82 = vmatpush1.bf16.msra.mxu0 0
    %83 = vmatprep.subr.bf16.mxu0 0
    %84 = vmatpush1.bf16.msra.mxu0 0
    %85 = vmatprep.subr.bf16.mxu0 0
    %86 = vmatpush1.bf16.msra.mxu0 0
    %87 = vmatprep.subr.bf16.mxu0 0
    %88 = vmatpush1.bf16.msra.mxu0 0
    %89 = vmatprep.subr.bf16.mxu0 0
    %90 = vmatpush1.bf16.msra.mxu0 0
    %91 = vmatprep.subr.bf16.mxu0 0
    %92 = vmatpush1.bf16.msra.mxu0 0
    %93 = vmatprep.subr.bf16.mxu0 0
    %94 = vmatpush1.bf16.msra.mxu0 0
    %95 = vmatprep.mubr.bf16.mxu0 0
    %96 = vmatmul.mubr.bf16.gmra.mrb[0].mxu0 %v61
    %v97 = vpop.f32.mrb[0].mxu0
    %v98 = vadd.f32 0.0, %v97
    %v99 = vpop.f32.mrb[0].mxu0
    %v100 = vpop.f32.mrb[0].mxu0
    %v101 = vadd.f32 0.0, %v100
    %v102 = vpop.f32.mrb[0].mxu0
    %103 = vdwg.mxu0
    %v104 = vadd.f32 %v48, %v98
    %v105 = vadd.f32 %v49, %v101
    %106 = vst.msk [vmem:[#allocation2] sm:$0xff] %vm59, %v104
    %107 = vst.msk [vmem:[#allocation2 + $0x8] sm:$0xff] %vm59, %v105
    // Predicated region
    $region22: #{tpu_custom_call.1} parent=1 // pred_check
      %p108 = pneg %p41
    $region23: #{tpu_custom_call.1} parent=1 // pred_check_branch
      %110 = sbr.rel (%p108) target = $region25
    $region24: #{tpu_custom_call.1} parent=1 // pred_region
      %v111 = vld [vmem:[#allocation2] sm:$0xff]
      %v112 = vld [vmem:[#allocation2 + $0x8] sm:$0xff]
      %v113 = vpack.c.bf16 %v112, %v111
      %v115 = vunpack.c.l.b16 %v113
      %v116 = vunpack.c.h.b16 %v113
      %v117 = vpack.c.b16 %v115, %v115
      %v118 = vpack.c.b16 %v116, %v116
      %vm121 = vcmask 257024
      %122 = vst.msk [vmem:[#allocation8] sm:$0xf] %vm121, %v117
      %123 = vst.msk [vmem:[#allocation8 + $0x4] sm:$0xf] %vm121, %v118
    $region25: #{tpu_custom_call.1} parent=1 // pred_fallthru
      _
    // Predicated region
    $region26: #{tpu_custom_call.1} parent=1 // pred_check
      _
    $region27: #{tpu_custom_call.1} parent=1 // pred_check_branch
      %125 = sbr.rel (0) target = $region29
    $region28: #{tpu_custom_call.1} parent=1 // pred_region
      %s127 = ssub.s32 128, 128
      %128 = vsyncadd [#allocation5], %s127
      %s129 = sshll.u32 [#allocation8], 4
      %s130 = int_to_ptr.vmem [resolvable:$true] %s129
      %135 = dma.vmem_to_hbm [thread:$0]  %s130, 128, %s2, [#allocation5], 64, 64, 4
    $region29: #{tpu_custom_call.1} parent=1 // pred_fallthru
      _
    // Predicated region
    $region30: #{tpu_custom_call.1} parent=1 // pred_check
      _
    $region31: #{tpu_custom_call.1} parent=1 // pred_check_branch
      %137 = sbr.rel (0) target = $region33
    $region32: #{tpu_custom_call.1} parent=1 // pred_region
      %138 = dma.done [#allocation5], 128
    $region33: #{tpu_custom_call.1} parent=1 // pred_fallthru
      _
    %139 = vsyncpa [#allocation4], 1
    %140 = vsyncpa [#allocation7], 1
    %141 = vsyncpa [#allocation5], 1

</llo_original>
